<compile_context>
chip_gen: v6e
topology: v6e:2x2x1
jax: 0.10.0
libtpu: 0.0.40
codegen_flags: <defaults>
</compile_context>

<pallas_src>
import functools

import jax
import jax.numpy as jnp
from jax.experimental import pallas as pl
from jax.experimental.pallas import tpu as pltpu

HIDDEN = 128
LANE = 128
LN_EPS = 1e-5
NEG_BIG = -1e30          # padded-logit bias -> softmax ~ 0 in padded columns
TARGET_TILE = 1024       # ~512-1024-row tiles amortize per-step overhead


def _round_up(a, m):
    return (a + m - 1) // m * m


def _cdiv(a, m):
    return (a + m - 1) // m


def _layernorm(h, gamma, beta):
    # One-pass moments: var = E[h^2] - mean^2 (clamped at 0).  Issues the two
    # XLU lane reductions back-to-back and drops one full-width VPU subtract.
    mu = jnp.mean(h, axis=-1, keepdims=True)
    ms = jnp.mean(h * h, axis=-1, keepdims=True)
    var = jnp.maximum(ms - mu * mu, 0.0)
    return (h - mu) * jax.lax.rsqrt(var + LN_EPS) * gamma + beta


def actor_kernel(x_ref, w1_ref, w2_ref, w3_ref, vec_ref, probs_ref,
                 *, action_dim, bf16_tanh):
    # Packed per-feature rows of the (8,128) f32 block:
    #   0:b1 1:gamma1 2:beta1 3:b2 4:gamma2 5:beta2 6:b3(padded with -1e30)
    b1, g1, be1 = vec_ref[0:1, :], vec_ref[1:2, :], vec_ref[2:3, :]
    b2, g2, be2 = vec_ref[3:4, :], vec_ref[4:5, :], vec_ref[5:6, :]
    b3 = vec_ref[6:7, :]

    act_dt = jnp.bfloat16 if bf16_tanh else jnp.float32

    # Layer 1: Linear -> LayerNorm -> Tanh  (bf16 MXU operands, f32 acc;
    # LayerNorm statistics in f32; tanh in bf16 on v6e/v7x).
    x = x_ref[...].astype(jnp.bfloat16)
    h = jnp.dot(x, w1_ref[...], preferred_element_type=jnp.float32) + b1
    h = jnp.tanh(_layernorm(h, g1, be1).astype(act_dt))

    # Layer 2: Linear -> LayerNorm -> Tanh
    h = jnp.dot(h.astype(jnp.bfloat16), w2_ref[...],
                preferred_element_type=jnp.float32) + b2
    h = jnp.tanh(_layernorm(h, g2, be2).astype(act_dt))

    # Action head: Linear -> Softmax over a lane-dense 128-wide row.  Padded
    # columns have w3 cols == 0 and b3 == -1e30, so exp() underflows to 0 and
    # the denominator is exact.  Only the first `action_dim` lanes are stored.
    logits = jnp.dot(h.astype(jnp.bfloat16), w3_ref[...],
                     preferred_element_type=jnp.float32) + b3
    m = jnp.max(logits, axis=-1, keepdims=True)
    e = jnp.exp(logits - m)
    denom = jnp.sum(e, axis=-1, keepdims=True)
    probs = e * pl.reciprocal(denom, approx=True)
    # Narrow, unpadded store: writes 128/action_dim x fewer HBM bytes than a
    # padded 128-lane output (masked vst, but the kernel is writeback-bound).
    probs_ref[...] = probs[:, :action_dim].astype(probs_ref.dtype)


def pack_params(p):
    """One-time prep: pad the action head to 128 lanes, cast weights to bf16,
    and pack the seven (1,128) vectors into one (8,128) f32 block."""
    action_dim = p["w3"].shape[1]
    assert action_dim <= HIDDEN, "packed-bias path assumes action_dim <= 128"
    pad_a = LANE

    w3p = jnp.zeros((HIDDEN, pad_a), jnp.float32).at[:, :action_dim].set(p["w3"])
    b3p = jnp.full((pad_a,), NEG_BIG, jnp.float32).at[:action_dim].set(
        p["b3"].reshape(-1))

    vec = jnp.zeros((8, HIDDEN), jnp.float32)
    for row, name in enumerate(("b1", "g1", "be1", "b2", "g2", "be2")):
        vec = vec.at[row].set(p[name].reshape(-1))
    vec = vec.at[6].set(b3p)

    return dict(
        w1=p["w1"].astype(jnp.bfloat16),
        w2=p["w2"].astype(jnp.bfloat16),
        w3=w3p.astype(jnp.bfloat16),
        vec=vec,
        action_dim=action_dim,
        pad_a=pad_a,
    )


def _default_bf16_tanh():
    """bf16 tanh is a win on v6e/v7x (bf16 EUP); not useful on v5e."""
    try:
        kind = jax.devices()[0].device_kind.lower()
        is_v5e = ("v5e" in kind) or ("v5 lite" in kind) or ("v5litepod" in kind)
        return not is_v5e
    except Exception:
        return True


def _choose_batch_tile(B, batch_tile):
    if batch_tile is not None:
        return max(8, _round_up(batch_tile, 8))
    # ~TARGET_TILE rows per step for large batches; >=2 steps whenever the
    # batch can usefully be split (feeds both v7x TensorCores) while keeping
    # batch padding to at most 7 rows of rounding per step.
    n_steps = max(1, _cdiv(B, TARGET_TILE))
    if B >= 16:
        n_steps = max(n_steps, 2)
    return max(8, _round_up(_cdiv(B, n_steps), 8))


def actor_forward(x, packed, *, batch_tile=None, out_dtype=jnp.bfloat16,
                  bf16_tanh=None):
    """Fused Actor forward.

    x: (batch, obs_dim) float32.  Returns (probs (batch, action_dim), None).
    out_dtype defaults to bf16 to halve output writeback; pass jnp.float32 if
    the consumer needs full-precision Categorical probs.
    """
    B, obs_dim = x.shape
    action_dim = packed["action_dim"]
    pad_a = packed["pad_a"]
    if bf16_tanh is None:
        bf16_tanh = _default_bf16_tanh()

    tb = _choose_batch_tile(B, batch_tile)
    Bp = _round_up(B, tb)
    if Bp != B:
        x = jnp.pad(x, ((0, Bp - B), (0, 0)))

    full = lambda shape: pl.BlockSpec(shape, lambda i: (0, 0))
    grid_spec = pltpu.PrefetchScalarGridSpec(
        num_scalar_prefetch=0,
        grid=(Bp // tb,),
        in_specs=[
            pl.BlockSpec((tb, obs_dim), lambda i: (i, 0)),  # x (streamed)
            full((obs_dim, HIDDEN)),                        # w1 (bf16, resident)
            full((HIDDEN, HIDDEN)),                         # w2 (bf16, resident)
            full((HIDDEN, pad_a)),                          # w3 padded (bf16)
            full((8, HIDDEN)),                              # packed b/gamma/beta
        ],
        # Unpadded output: last block dim == full array dim (action_dim).
        out_specs=pl.BlockSpec((tb, action_dim), lambda i: (i, 0)),
    )

    kernel = functools.partial(actor_kernel, action_dim=action_dim,
                               bf16_tanh=bf16_tanh)

    probs = pl.pallas_call(
        kernel,
        out_shape=jax.ShapeDtypeStruct((Bp, action_dim), out_dtype),
        grid_spec=grid_spec,
        compiler_params=pltpu.CompilerParams(
            dimension_semantics=("parallel",)),
    )(x, packed["w1"], packed["w2"], packed["w3"], packed["vec"])

    if Bp != B:                  # slice only when the batch was actually padded
        probs = probs[:B]
    return probs, None           # hidden=None (no RNN)


def init_params(key, obs_dim, action_dim):
    """Deterministic synthetic parameters (PyTorch-like uniform fan-in init)."""
    ks = jax.random.split(key, 6)

    def lin(kw, kb, fan_in, fan_out):
        bound = 1.0 / jnp.sqrt(fan_in)
        w = jax.random.uniform(kw, (fan_in, fan_out), jnp.float32, -bound, bound)
        b = jax.random.uniform(kb, (1, fan_out), jnp.float32, -bound, bound)
        return w, b

    w1, b1 = lin(ks[0], ks[1], obs_dim, HIDDEN)
    w2, b2 = lin(ks[2], ks[3], HIDDEN, HIDDEN)
    w3, b3 = lin(ks[4], ks[5], HIDDEN, action_dim)
    ones = jnp.ones((1, HIDDEN), jnp.float32)
    zeros = jnp.zeros((1, HIDDEN), jnp.float32)
    return dict(w1=w1, b1=b1, g1=ones, be1=zeros,
                w2=w2, b2=b2, g2=ones, be2=zeros,
                w3=w3, b3=b3)


def actor_forward_ref(x, p):
    """Pure-JAX f32 reference for verification."""
    h = x @ p["w1"] + p["b1"]
    mu = h.mean(-1, keepdims=True)
    var = ((h - mu) ** 2).mean(-1, keepdims=True)
    h = jnp.tanh((h - mu) / jnp.sqrt(var + LN_EPS) * p["g1"] + p["be1"])
    h = h @ p["w2"] + p["b2"]
    mu = h.mean(-1, keepdims=True)
    var = ((h - mu) ** 2).mean(-1, keepdims=True)
    h = jnp.tanh((h - mu) / jnp.sqrt(var + LN_EPS) * p["g2"] + p["be2"])
    logits = h @ p["w3"] + p["b3"]
    return jax.nn.softmax(logits, axis=-1)


if __name__ == "__main__":
    key = jax.random.PRNGKey(0)
    k_x, k_p = jax.random.split(key)

    obs_dim, action_dim = 32, 8
    params = init_params(k_p, obs_dim, action_dim)
    packed = pack_params(params)

    # batch=8: single tiny tile; batch=400: two 200-row tiles, no batch pad;
    # batch=530: two 272-row tiles, exercises batch padding + tail slice.
    for batch in (8, 400, 530):
        kx = jax.random.fold_in(k_x, batch)
        x = jax.random.normal(kx, (batch, obs_dim), jnp.float32)
        ref = actor_forward_ref(x, params)

        # Default path: bf16 output (minimum writeback).
        probs, hidden = actor_forward(x, packed)
        probs = jax.block_until_ready(probs)
        assert probs.shape == (batch, action_dim)
        assert hidden is None
        p32 = probs.astype(jnp.float32)
        # Tolerances account for bf16 matmuls/output + approx reciprocal.
        assert jnp.allclose(jnp.sum(p32, axis=-1), 1.0, atol=1e-2)
        assert jnp.allclose(p32, ref, atol=2e-2), float(
            jnp.max(jnp.abs(p32 - ref)))

        # f32-output path (tighter normalization check).
        probs32, _ = actor_forward(x, packed, out_dtype=jnp.float32)
        probs32 = jax.block_until_ready(probs32)
        assert probs32.shape == (batch, action_dim)
        assert jnp.allclose(jnp.sum(probs32, axis=-1), 1.0, atol=5e-3)
        assert jnp.allclose(probs32, ref, atol=2e-2), float(
            jnp.max(jnp.abs(probs32 - ref)))

    print("KERNEL_OK")
</pallas_src>

<mosaic_0001>
module attributes {stable_mosaic.version = 11 : i64} {
  func.func @actor_kernel(%arg0: i32, %arg1: memref<8x32xf32, #tpu.memory_space<vmem>>, %arg2: memref<32x128xbf16, #tpu.memory_space<vmem>>, %arg3: memref<128x128xbf16, #tpu.memory_space<vmem>>, %arg4: memref<128x128xbf16, #tpu.memory_space<vmem>>, %arg5: memref<8x128xf32, #tpu.memory_space<vmem>>, %arg6: memref<8x8xbf16, #tpu.memory_space<vmem>>) attributes {dimension_semantics = [#tpu.dimension_semantics<parallel>], iteration_bounds = array<i64: 1>, scalar_prefetch = 0 : i64, scratch_operands = 0 : i64, tpu.core_type = #tpu.core_type<tc>, window_params = [{transform_indices = @transform_0, window_bounds = array<i64: 8, 32>}, {pipeline_mode = #tpu.pipeline_mode<synchronous>, transform_indices = @transform_1, window_bounds = array<i64: 32, 128>}, {pipeline_mode = #tpu.pipeline_mode<synchronous>, transform_indices = @transform_2, window_bounds = array<i64: 128, 128>}, {pipeline_mode = #tpu.pipeline_mode<synchronous>, transform_indices = @transform_3, window_bounds = array<i64: 128, 128>}, {pipeline_mode = #tpu.pipeline_mode<synchronous>, transform_indices = @transform_4, window_bounds = array<i64: 8, 128>}, {transform_indices = @transform_5, window_bounds = array<i64: 8, 8>}]} {
    %c0 = arith.constant 0 : index
    %c0_0 = arith.constant 0 : index
    %0 = vector.load %arg5[%c0, %c0_0] : memref<8x128xf32, #tpu.memory_space<vmem>>, vector<1x128xf32>
    %c1 = arith.constant 1 : index
    %c0_1 = arith.constant 0 : index
    %1 = vector.load %arg5[%c1, %c0_1] : memref<8x128xf32, #tpu.memory_space<vmem>>, vector<1x128xf32>
    %c2 = arith.constant 2 : index
    %c0_2 = arith.constant 0 : index
    %2 = vector.load %arg5[%c2, %c0_2] : memref<8x128xf32, #tpu.memory_space<vmem>>, vector<1x128xf32>
    %c3 = arith.constant 3 : index
    %c0_3 = arith.constant 0 : index
    %3 = vector.load %arg5[%c3, %c0_3] : memref<8x128xf32, #tpu.memory_space<vmem>>, vector<1x128xf32>
    %c4 = arith.constant 4 : index
    %c0_4 = arith.constant 0 : index
    %4 = vector.load %arg5[%c4, %c0_4] : memref<8x128xf32, #tpu.memory_space<vmem>>, vector<1x128xf32>
    %c5 = arith.constant 5 : index
    %c0_5 = arith.constant 0 : index
    %5 = vector.load %arg5[%c5, %c0_5] : memref<8x128xf32, #tpu.memory_space<vmem>>, vector<1x128xf32>
    %c6 = arith.constant 6 : index
    %c0_6 = arith.constant 0 : index
    %6 = vector.load %arg5[%c6, %c0_6] : memref<8x128xf32, #tpu.memory_space<vmem>>, vector<1x128xf32>
    %c0_7 = arith.constant 0 : index
    %c0_8 = arith.constant 0 : index
    %7 = vector.load %arg1[%c0_7, %c0_8] : memref<8x32xf32, #tpu.memory_space<vmem>>, vector<8x32xf32>
    %8 = arith.truncf %7 : vector<8x32xf32> to vector<8x32xbf16>
    %c0_9 = arith.constant 0 : index
    %c0_10 = arith.constant 0 : index
    %9 = vector.load %arg2[%c0_9, %c0_10] : memref<32x128xbf16, #tpu.memory_space<vmem>>, vector<32x128xbf16>
    %cst = arith.constant dense<0.000000e+00> : vector<8x128xf32>
    %10 = tpu.matmul %8, %9, %cst {dimension_numbers = #tpu.dot_dimension_numbers<[1], [0], [0], [1], [0, 0, 1, 1], [], []>} : vector<8x32xbf16>, vector<32x128xbf16>, vector<8x128xf32> -> vector<8x128xf32>
    %11 = vector.broadcast %0 : vector<1x128xf32> to vector<8x128xf32>
    %12 = arith.addf %10, %11 : vector<8x128xf32>
    %cst_11 = arith.constant dense<0.000000e+00> : vector<8xf32>
    %13 = vector.multi_reduction <add>, %12, %cst_11 [1] : vector<8x128xf32> to vector<8xf32>
    %14 = vector.shape_cast %13 : vector<8xf32> to vector<8x1xf32>
    %cst_12 = arith.constant 1.280000e+02 : f32
    %15 = vector.broadcast %cst_12 : f32 to vector<8x1xf32>
    %16 = arith.divf %14, %15 : vector<8x1xf32>
    %17 = arith.mulf %12, %12 : vector<8x128xf32>
    %cst_13 = arith.constant dense<0.000000e+00> : vector<8xf32>
    %18 = vector.multi_reduction <add>, %17, %cst_13 [1] : vector<8x128xf32> to vector<8xf32>
    %19 = vector.shape_cast %18 : vector<8xf32> to vector<8x1xf32>
    %cst_14 = arith.constant 1.280000e+02 : f32
    %20 = vector.broadcast %cst_14 : f32 to vector<8x1xf32>
    %21 = arith.divf %19, %20 : vector<8x1xf32>
    %22 = arith.mulf %16, %16 : vector<8x1xf32>
    %23 = arith.subf %21, %22 : vector<8x1xf32>
    %cst_15 = arith.constant 0.000000e+00 : f32
    %24 = vector.broadcast %cst_15 : f32 to vector<8x1xf32>
    %25 = arith.maximumf %23, %24 : vector<8x1xf32>
    %26 = vector.broadcast %16 : vector<8x1xf32> to vector<8x128xf32>
    %27 = arith.subf %12, %26 : vector<8x128xf32>
    %cst_16 = arith.constant 9.99999974E-6 : f32
    %28 = vector.broadcast %cst_16 : f32 to vector<8x1xf32>
    %29 = arith.addf %25, %28 : vector<8x1xf32>
    %30 = math.rsqrt %29 : vector<8x1xf32>
    %31 = vector.broadcast %30 : vector<8x1xf32> to vector<8x128xf32>
    %32 = arith.mulf %27, %31 : vector<8x128xf32>
    %33 = vector.broadcast %1 : vector<1x128xf32> to vector<8x128xf32>
    %34 = arith.mulf %32, %33 : vector<8x128xf32>
    %35 = vector.broadcast %2 : vector<1x128xf32> to vector<8x128xf32>
    %36 = arith.addf %34, %35 : vector<8x128xf32>
    %37 = arith.truncf %36 : vector<8x128xf32> to vector<8x128xbf16>
    %38 = math.tanh %37 : vector<8x128xbf16>
    %c0_17 = arith.constant 0 : index
    %c0_18 = arith.constant 0 : index
    %39 = vector.load %arg3[%c0_17, %c0_18] : memref<128x128xbf16, #tpu.memory_space<vmem>>, vector<128x128xbf16>
    %cst_19 = arith.constant dense<0.000000e+00> : vector<8x128xf32>
    %40 = tpu.matmul %38, %39, %cst_19 {dimension_numbers = #tpu.dot_dimension_numbers<[1], [0], [0], [1], [0, 0, 1, 1], [], []>} : vector<8x128xbf16>, vector<128x128xbf16>, vector<8x128xf32> -> vector<8x128xf32>
    %41 = vector.broadcast %3 : vector<1x128xf32> to vector<8x128xf32>
    %42 = arith.addf %40, %41 : vector<8x128xf32>
    %cst_20 = arith.constant dense<0.000000e+00> : vector<8xf32>
    %43 = vector.multi_reduction <add>, %42, %cst_20 [1] : vector<8x128xf32> to vector<8xf32>
    %44 = vector.shape_cast %43 : vector<8xf32> to vector<8x1xf32>
    %cst_21 = arith.constant 1.280000e+02 : f32
    %45 = vector.broadcast %cst_21 : f32 to vector<8x1xf32>
    %46 = arith.divf %44, %45 : vector<8x1xf32>
    %47 = arith.mulf %42, %42 : vector<8x128xf32>
    %cst_22 = arith.constant dense<0.000000e+00> : vector<8xf32>
    %48 = vector.multi_reduction <add>, %47, %cst_22 [1] : vector<8x128xf32> to vector<8xf32>
    %49 = vector.shape_cast %48 : vector<8xf32> to vector<8x1xf32>
    %cst_23 = arith.constant 1.280000e+02 : f32
    %50 = vector.broadcast %cst_23 : f32 to vector<8x1xf32>
    %51 = arith.divf %49, %50 : vector<8x1xf32>
    %52 = arith.mulf %46, %46 : vector<8x1xf32>
    %53 = arith.subf %51, %52 : vector<8x1xf32>
    %cst_24 = arith.constant 0.000000e+00 : f32
    %54 = vector.broadcast %cst_24 : f32 to vector<8x1xf32>
    %55 = arith.maximumf %53, %54 : vector<8x1xf32>
    %56 = vector.broadcast %46 : vector<8x1xf32> to vector<8x128xf32>
    %57 = arith.subf %42, %56 : vector<8x128xf32>
    %cst_25 = arith.constant 9.99999974E-6 : f32
    %58 = vector.broadcast %cst_25 : f32 to vector<8x1xf32>
    %59 = arith.addf %55, %58 : vector<8x1xf32>
    %60 = math.rsqrt %59 : vector<8x1xf32>
    %61 = vector.broadcast %60 : vector<8x1xf32> to vector<8x128xf32>
    %62 = arith.mulf %57, %61 : vector<8x128xf32>
    %63 = vector.broadcast %4 : vector<1x128xf32> to vector<8x128xf32>
    %64 = arith.mulf %62, %63 : vector<8x128xf32>
    %65 = vector.broadcast %5 : vector<1x128xf32> to vector<8x128xf32>
    %66 = arith.addf %64, %65 : vector<8x128xf32>
    %67 = arith.truncf %66 : vector<8x128xf32> to vector<8x128xbf16>
    %68 = math.tanh %67 : vector<8x128xbf16>
    %c0_26 = arith.constant 0 : index
    %c0_27 = arith.constant 0 : index
    %69 = vector.load %arg4[%c0_26, %c0_27] : memref<128x128xbf16, #tpu.memory_space<vmem>>, vector<128x128xbf16>
    %cst_28 = arith.constant dense<0.000000e+00> : vector<8x128xf32>
    %70 = tpu.matmul %68, %69, %cst_28 {dimension_numbers = #tpu.dot_dimension_numbers<[1], [0], [0], [1], [0, 0, 1, 1], [], []>} : vector<8x128xbf16>, vector<128x128xbf16>, vector<8x128xf32> -> vector<8x128xf32>
    %71 = vector.broadcast %6 : vector<1x128xf32> to vector<8x128xf32>
    %72 = arith.addf %70, %71 : vector<8x128xf32>
    %cst_29 = arith.constant dense<0xFF800000> : vector<8xf32>
    %73 = vector.multi_reduction <maximumf>, %72, %cst_29 [1] : vector<8x128xf32> to vector<8xf32>
    %74 = vector.shape_cast %73 : vector<8xf32> to vector<8x1xf32>
    %75 = vector.broadcast %74 : vector<8x1xf32> to vector<8x128xf32>
    %76 = arith.subf %72, %75 : vector<8x128xf32>
    %77 = math.exp %76 : vector<8x128xf32>
    %cst_30 = arith.constant dense<0.000000e+00> : vector<8xf32>
    %78 = vector.multi_reduction <add>, %77, %cst_30 [1] : vector<8x128xf32> to vector<8xf32>
    %79 = vector.shape_cast %78 : vector<8xf32> to vector<8x1xf32>
    %80 = tpu.reciprocal %79 {approx = true} : vector<8x1xf32> -> vector<8x1xf32>
    %81 = vector.broadcast %80 : vector<8x1xf32> to vector<8x128xf32>
    %82 = arith.mulf %77, %81 : vector<8x128xf32>
    %83 = vector.extract_strided_slice %82 {offsets = [0, 0], sizes = [8, 8], strides = [1, 1]} : vector<8x128xf32> to vector<8x8xf32>
    %84 = arith.truncf %83 : vector<8x8xf32> to vector<8x8xbf16>
    %c0_31 = arith.constant 0 : index
    %c0_32 = arith.constant 0 : index
    %85 = vector.load %arg6[%c0_31, %c0_32] : memref<8x8xbf16, #tpu.memory_space<vmem>>, vector<8x8xbf16>
    tpu.vector_store %arg6[%c0_31, %c0_32], %84 {strides = array<i32>} : memref<8x8xbf16, #tpu.memory_space<vmem>>, vector<8x8xbf16>,
    return
  }
  func.func @transform_0(%arg0: i32) -> (i32, i32) {
    %c0_i32 = arith.constant 0 : i32
    %c0_i32_0 = arith.constant 0 : i32
    return %arg0, %c0_i32 : i32, i32
  }
  func.func @transform_1(%arg0: i32) -> (i32, i32) {
    %c0_i32 = arith.constant 0 : i32
    %c0_i32_0 = arith.constant 0 : i32
    %c0_i32_1 = arith.constant 0 : i32
    return %c0_i32, %c0_i32_0 : i32, i32
  }
  func.func @transform_2(%arg0: i32) -> (i32, i32) {
    %c0_i32 = arith.constant 0 : i32
    %c0_i32_0 = arith.constant 0 : i32
    %c0_i32_1 = arith.constant 0 : i32
    return %c0_i32, %c0_i32_0 : i32, i32
  }
  func.func @transform_3(%arg0: i32) -> (i32, i32) {
    %c0_i32 = arith.constant 0 : i32
    %c0_i32_0 = arith.constant 0 : i32
    %c0_i32_1 = arith.constant 0 : i32
    return %c0_i32, %c0_i32_0 : i32, i32
  }
  func.func @transform_4(%arg0: i32) -> (i32, i32) {
    %c0_i32 = arith.constant 0 : i32
    %c0_i32_0 = arith.constant 0 : i32
    %c0_i32_1 = arith.constant 0 : i32
    return %c0_i32, %c0_i32_0 : i32, i32
  }
  func.func @transform_5(%arg0: i32) -> (i32, i32) {
    %c0_i32 = arith.constant 0 : i32
    %c0_i32_0 = arith.constant 0 : i32
    return %arg0, %c0_i32 : i32, i32
  }
}

</mosaic_0001>

<llo_original>
// kernel: tpu_custom_call.1
$region0: #{tpu_custom_call.1}
  #allocation0 [shape = 'u32[]', space=smem, size = 0x4, offset = 0x4, fixed_abs, tag = 'smem constant byte address 0x4 - core index']
  #allocation1 [shape = 'u32[144,128]{1,0:T(1,128)}', space=vmem, size = 0x12000, scoped, tag = 'internal scratch']
  %s0 = inlined_call_operand.hbm [shape: f32[8,32], index: 0, kind: input, shape index: {}]
  %s1 = inlined_call_operand.hbm [shape: bf16[32,128], index: 1, kind: input, shape index: {}]
  %s2 = inlined_call_operand.hbm [shape: bf16[128,128], index: 2, kind: input, shape index: {}]
  %s3 = inlined_call_operand.hbm [shape: bf16[128,128], index: 3, kind: input, shape index: {}]
  %s4 = inlined_call_operand.hbm [shape: f32[8,128], index: 4, kind: input, shape index: {}]
  %s5 = inlined_call_operand.hbm [shape: bf16[8,8], index: 5, kind: output, shape index: {}]
  %s6 = sld [smem:[#allocation0]]
  $region50: #{tpu_custom_call.1} parent=0
    _
  %s8 = ssub.s32 1, %s6
  %s9 = scalar_select 0, %s8, %s6
  $region1: #{tpu_custom_call.1} parent=0
    #allocation2 [shape = 'u8[4096]{0}', space=vmem, size = 0x1000, scoped, tag = 'input window, operand 0, single buffered']
    #allocation3 [shape = 's32[1]{0}', space=sflag, size = 0x4, scoped, tag = 'scoped memory for tpu_custom_call.1']
    #allocation4 [shape = 's32[1]{0}', space=sflag, size = 0x4, scoped, tag = 'scoped memory for tpu_custom_call.1']
    #allocation5 [shape = 'u8[8192]{0}', space=vmem, size = 0x2000, scoped, tag = 'input window, operand 1, single buffered']
    #allocation6 [shape = 's32[1]{0}', space=sflag, size = 0x4, scoped, tag = 'scoped memory for tpu_custom_call.1']
    #allocation7 [shape = 'u8[32768]{0}', space=vmem, size = 0x8000, scoped, tag = 'input window, operand 2, single buffered']
    #allocation8 [shape = 'u8[32768]{0}', space=vmem, size = 0x8000, scoped, tag = 'input window, operand 3, single buffered']
    #allocation9 [shape = 's32[1]{0}', space=sflag, size = 0x4, scoped, tag = 'scoped memory for tpu_custom_call.1']
    #allocation10 [shape = 'u8[4096]{0}', space=vmem, size = 0x1000, scoped, tag = 'input window, operand 4, single buffered']
    #allocation11 [shape = 'u8[2048]{0}', space=vmem, size = 0x800, scoped, tag = 'output window, operand 0, single buffered']
    %10 = vsyncpa [#allocation3], 0
    %11 = vsyncpa [#allocation6], 0
    %12 = vsyncpa [#allocation9], 0
    %13 = vsyncpa [#allocation4], 0
    // Predicated region
    $region2: #{tpu_custom_call.1} parent=1 // pred_check
      _
    $region3: #{tpu_custom_call.1} parent=1 // pred_check_branch
      %15 = sbr.rel (0) target = $region5
    $region4: #{tpu_custom_call.1} parent=1 // pred_region
      %s17 = ssub.s32 128, 128
      %18 = vsyncadd [#allocation3], %s17
      %s20 = sshll.u32 [#allocation2], 4
      %s21 = int_to_ptr.vmem [resolvable:$true] %s20
      %23 = dma.hbm_to_vmem [thread:$0]  %s0, 128, %s21, [#allocation3]
    $region5: #{tpu_custom_call.1} parent=1 // pred_fallthru
      _
    // Predicated region
    $region6: #{tpu_custom_call.1} parent=1 // pred_check
      _
    $region7: #{tpu_custom_call.1} parent=1 // pred_check_branch
      %25 = sbr.rel (0) target = $region9
    $region8: #{tpu_custom_call.1} parent=1 // pred_region
      %s27 = ssub.s32 256, 256
      %28 = vsyncadd [#allocation6], %s27
      %s29 = sshll.u32 [#allocation5], 4
      %s30 = int_to_ptr.vmem [resolvable:$true] %s29
      %35 = dma.hbm_to_vmem [thread:$0]  %s1, 256, %s30, [#allocation6], 64, 64, 4
    $region9: #{tpu_custom_call.1} parent=1 // pred_fallthru
      _
    // Predicated region
    $region10: #{tpu_custom_call.1} parent=1 // pred_check
      _
    $region11: #{tpu_custom_call.1} parent=1 // pred_check_branch
      %37 = sbr.rel (0) target = $region13
    $region12: #{tpu_custom_call.1} parent=1 // pred_region
      %s39 = ssub.s32 1024, 1024
      %40 = vsyncadd [#allocation6], %s39
      %s41 = sshll.u32 [#allocation7], 4
      %s42 = int_to_ptr.vmem [resolvable:$true] %s41
      %47 = dma.hbm_to_vmem [thread:$0]  %s2, 1024, %s42, [#allocation6], 64, 64, 4
    $region13: #{tpu_custom_call.1} parent=1 // pred_fallthru
      _
    // Predicated region
    $region14: #{tpu_custom_call.1} parent=1 // pred_check
      _
    $region15: #{tpu_custom_call.1} parent=1 // pred_check_branch
      %49 = sbr.rel (0) target = $region17
    $region16: #{tpu_custom_call.1} parent=1 // pred_region
      %s51 = ssub.s32 1024, 1024
      %52 = vsyncadd [#allocation9], %s51
      %s53 = sshll.u32 [#allocation8], 4
      %s54 = int_to_ptr.vmem [resolvable:$true] %s53
      %59 = dma.hbm_to_vmem [thread:$0]  %s3, 1024, %s54, [#allocation9], 64, 64, 4
    $region17: #{tpu_custom_call.1} parent=1 // pred_fallthru
      _
    // Predicated region
    $region18: #{tpu_custom_call.1} parent=1 // pred_check
      _
    $region19: #{tpu_custom_call.1} parent=1 // pred_check_branch
      %61 = sbr.rel (0) target = $region21
    $region20: #{tpu_custom_call.1} parent=1 // pred_region
      %s63 = ssub.s32 128, 128
      %64 = vsyncadd [#allocation9], %s63
      %s66 = sshll.u32 [#allocation10], 4
      %s67 = int_to_ptr.vmem [resolvable:$true] %s66
      %69 = dma.hbm_to_vmem [thread:$0]  %s4, 128, %s67, [#allocation9]
    $region21: #{tpu_custom_call.1} parent=1 // pred_fallthru
      _
    // Predicated region
    $region22: #{tpu_custom_call.1} parent=1 // pred_check
      _
    $region23: #{tpu_custom_call.1} parent=1 // pred_check_branch
      %71 = sbr.rel (0) target = $region25
    $region24: #{tpu_custom_call.1} parent=1 // pred_region
      %72 = dma.done [#allocation3], 128
    $region25: #{tpu_custom_call.1} parent=1 // pred_fallthru
      _
    // Predicated region
    $region26: #{tpu_custom_call.1} parent=1 // pred_check
      _
    $region27: #{tpu_custom_call.1} parent=1 // pred_check_branch
      %74 = sbr.rel (0) target = $region29
    $region28: #{tpu_custom_call.1} parent=1 // pred_region
      %75 = dma.done [#allocation6], 256
    $region29: #{tpu_custom_call.1} parent=1 // pred_fallthru
      _
    // Predicated region
    $region30: #{tpu_custom_call.1} parent=1 // pred_check
      _
    $region31: #{tpu_custom_call.1} parent=1 // pred_check_branch
      %77 = sbr.rel (0) target = $region33
    $region32: #{tpu_custom_call.1} parent=1 // pred_region
      %78 = dma.done [#allocation6], 1024
    $region33: #{tpu_custom_call.1} parent=1 // pred_fallthru
      _
    // Predicated region
    $region34: #{tpu_custom_call.1} parent=1 // pred_check
      _
    $region35: #{tpu_custom_call.1} parent=1 // pred_check_branch
      %80 = sbr.rel (0) target = $region37
    $region36: #{tpu_custom_call.1} parent=1 // pred_region
      %81 = dma.done [#allocation9], 1024
    $region37: #{tpu_custom_call.1} parent=1 // pred_fallthru
      _
    // Predicated region
    $region38: #{tpu_custom_call.1} parent=1 // pred_check
      _
    $region39: #{tpu_custom_call.1} parent=1 // pred_check_branch
      %83 = sbr.rel (0) target = $region41
    $region40: #{tpu_custom_call.1} parent=1 // pred_region
      %84 = dma.done [#allocation9], 128
    $region41: #{tpu_custom_call.1} parent=1 // pred_fallthru
      _
    %v86 = vld [vmem:[#allocation10] sm:$0x1]
    %v87 = vld [vmem:[#allocation10 + $0x1] sm:$0x1]
    %v88 = vld [vmem:[#allocation10 + $0x2] sm:$0x1]
    %v89 = vld [vmem:[#allocation10 + $0x3] sm:$0x1]
    %v90 = vld [vmem:[#allocation10 + $0x4] sm:$0x1]
    %v91 = vld [vmem:[#allocation10 + $0x5] sm:$0x1]
    %v92 = vld [vmem:[#allocation10 + $0x6] sm:$0x1]
    %v93 = vld [vmem:[#allocation2] sm:$0xff]
    %v94 = vpack.c.bf16 %v93, %v93
    %v95 = vld [vmem:[#allocation5] sm:$0xf]
    %v96 = vld [vmem:[#allocation5 + $0x4] sm:$0xf]
    %v97 = vld [vmem:[#allocation5 + $0x8] sm:$0xf]
    %v98 = vld [vmem:[#allocation5 + $0xc] sm:$0xf]
    %v99 = vlaneseq
    %v100 = vshrl.u32 %v99, 7
    %v101 = vsub.s32 0, %v100
    %v102 = vrot.slane %v86, %v101
    %v107 = vunpack.c.l.b16 %v95
    %v108 = vunpack.c.l.b16 %v96
    %v109 = vunpack.c.l.b16 %v97
    %v110 = vunpack.c.l.b16 %v98
    %v111 = vpack.c.b16 %v108, %v107
    %v112 = vpack.c.b16 %v110, %v109
    %vm115 = vcmask 261120
    %v117 = vsel %vm115, %v94, 0
    %119 = vmatprep.subr.bf16.mxu0 0
    %120 = vmatpush1.bf16.msra.mxu0 0
    %121 = vmatprep.subr.bf16.mxu0 0
    %122 = vmatpush1.bf16.msra.mxu0 0
    %123 = vmatprep.subr.bf16.mxu0 0
    %124 = vmatpush1.bf16.msra.mxu0 0
    %125 = vmatprep.subr.bf16.mxu0 0
    %126 = vmatpush1.bf16.msra.mxu0 0
    %127 = vmatprep.subr.bf16.mxu0 0
    %128 = vmatpush1.bf16.msra.mxu0 0
    %129 = vmatprep.subr.bf16.mxu0 0
    %130 = vmatpush1.bf16.msra.mxu0 0
    %131 = vmatprep.subr.bf16.mxu0 0
    %132 = vmatpush1.bf16.msra.mxu0 %v112
    %133 = vmatprep.subr.bf16.mxu0 0
    %134 = vmatpush1.bf16.msra.mxu0 %v111
    %135 = vmatprep.subr.bf16.mxu0 0
    %136 = vmatpush2.bf16.msra.mxu0 0
    %137 = vmatprep.subr.bf16.mxu0 0
    %138 = vmatpush2.bf16.msra.mxu0 0
    %139 = vmatprep.subr.bf16.mxu0 0
    %140 = vmatpush2.bf16.msra.mxu0 0
    %141 = vmatprep.subr.bf16.mxu0 0
    %142 = vmatpush2.bf16.msra.mxu0 0
    %143 = vmatprep.subr.bf16.mxu0 0
    %144 = vmatpush2.bf16.msra.mxu0 0
    %145 = vmatprep.subr.bf16.mxu0 0
    %146 = vmatpush2.bf16.msra.mxu0 0
    %147 = vmatprep.subr.bf16.mxu0 0
    %148 = vmatpush2.bf16.msra.mxu0 0
    %149 = vmatprep.subr.bf16.mxu0 0
    %150 = vmatpush2.bf16.msra.mxu0 0
    %151 = vmatprep.mubr.bf16.mxu0 0
    %152 = vmatmul.mubr.bf16.gmra.mxu0 %v117
    %v153 = vpop.f32.mrf.mxu0
    %v154 = vadd.f32 %v102, %v153
    %v155 = vpop.f32.mrf.mxu0
    %v156 = vpop.f32.mrf.mxu0
    %v157 = vpop.f32.mrf.mxu0
    %158 = vdwg.mxu0
    %159 = vadd.xlane.f32.xlu0 %v154
    %v160 = vpop.xlane.xlu0 %159
    %v161 = vrcp.pop 128.0
    %v162 = vmul.f32 %v160, %v161
    %v163 = vmul.f32 %v154, %v154
    %164 = vadd.xlane.f32.xlu0 %v163
    %v165 = vpop.xlane.xlu0 %164
    %v166 = vmul.f32 %v165, %v161
    %v167 = vmul.f32 %v162, %v162
    %v168 = vsub.f32 %v166, %v167
    %v169 = vmax.f32 %v168, 0.0
    %v170 = vsub.f32 %v154, %v162
    %v171 = vadd.f32 %v169, 1e-05
    %v172 = vrsqrt.pop %v171
    %v173 = vmul.f32 %v170, %v172
    %v174 = vlaneseq
    %v175 = vshrl.u32 %v174, 7
    %v176 = vsub.s32 0, %v175
    %v177 = vrot.slane %v87, %v176
    %v178 = vmul.f32 %v173, %v177
    %v179 = vlaneseq
    %v180 = vshrl.u32 %v179, 7
    %v181 = vsub.s32 0, %v180
    %v182 = vrot.slane %v88, %v181
    %v183 = vadd.f32 %v178, %v182
    %v184 = vpack.c.bf16 %v183, %v183
    %v185 = vtanh.bf16.pop %v184
    %v186 = vld [vmem:[#allocation7] sm:$0xf]
    %v187 = vld [vmem:[#allocation7 + $0x4] sm:$0xf]
    %v188 = vld [vmem:[#allocation7 + $0x8] sm:$0xf]
    %v189 = vld [vmem:[#allocation7 + $0xc] sm:$0xf]
    %v190 = vld [vmem:[#allocation7 + $0x10] sm:$0xf]
    %v191 = vld [vmem:[#allocation7 + $0x14] sm:$0xf]
    %v192 = vld [vmem:[#allocation7 + $0x18] sm:$0xf]
    %v193 = vld [vmem:[#allocation7 + $0x1c] sm:$0xf]
    %v194 = vld [vmem:[#allocation7 + $0x20] sm:$0xf]
    %v195 = vld [vmem:[#allocation7 + $0x24] sm:$0xf]
    %v196 = vld [vmem:[#allocation7 + $0x28] sm:$0xf]
    %v197 = vld [vmem:[#allocation7 + $0x2c] sm:$0xf]
    %v198 = vld [vmem:[#allocation7 + $0x30] sm:$0xf]
    %v199 = vld [vmem:[#allocation7 + $0x34] sm:$0xf]
    %v200 = vld [vmem:[#allocation7 + $0x38] sm:$0xf]
    %v201 = vld [vmem:[#allocation7 + $0x3c] sm:$0xf]
    %v202 = vlaneseq
    %v203 = vshrl.u32 %v202, 7
    %v204 = vsub.s32 0, %v203
    %v205 = vrot.slane %v89, %v204
    %v222 = vunpack.c.l.b16 %v186
    %v223 = vunpack.c.l.b16 %v187
    %v224 = vunpack.c.l.b16 %v188
    %v225 = vunpack.c.l.b16 %v189
    %v226 = vunpack.c.l.b16 %v190
    %v227 = vunpack.c.l.b16 %v191
    %v228 = vunpack.c.l.b16 %v192
    %v229 = vunpack.c.l.b16 %v193
    %v230 = vunpack.c.l.b16 %v194
    %v231 = vunpack.c.l.b16 %v195
    %v232 = vunpack.c.l.b16 %v196
    %v233 = vunpack.c.l.b16 %v197
    %v234 = vunpack.c.l.b16 %v198
    %v235 = vunpack.c.l.b16 %v199
    %v236 = vunpack.c.l.b16 %v200
    %v237 = vunpack.c.l.b16 %v201
    %v238 = vpack.c.b16 %v223, %v222
    %v239 = vpack.c.b16 %v225, %v224
    %v240 = vpack.c.b16 %v227, %v226
    %v241 = vpack.c.b16 %v229, %v228
    %v242 = vpack.c.b16 %v231, %v230
    %v243 = vpack.c.b16 %v233, %v232
    %v244 = vpack.c.b16 %v235, %v234
    %v245 = vpack.c.b16 %v237, %v236
    %254 = vmatprep.subr.bf16.mxu0 0
    %255 = vmatpush1.bf16.msra.mxu0 %v245
    %256 = vmatprep.subr.bf16.mxu0 0
    %257 = vmatpush1.bf16.msra.mxu0 %v244
    %258 = vmatprep.subr.bf16.mxu0 0
    %259 = vmatpush1.bf16.msra.mxu0 %v243
    %260 = vmatprep.subr.bf16.mxu0 0
    %261 = vmatpush1.bf16.msra.mxu0 %v242
    %262 = vmatprep.subr.bf16.mxu0 0
    %263 = vmatpush1.bf16.msra.mxu0 %v241
    %264 = vmatprep.subr.bf16.mxu0 0
    %265 = vmatpush1.bf16.msra.mxu0 %v240
    %266 = vmatprep.subr.bf16.mxu0 0
    %267 = vmatpush1.bf16.msra.mxu0 %v239
    %268 = vmatprep.subr.bf16.mxu0 0
    %269 = vmatpush1.bf16.msra.mxu0 %v238
    %270 = vmatprep.subr.bf16.mxu0 0
    %271 = vmatpush2.bf16.msra.mxu0 0
    %272 = vmatprep.subr.bf16.mxu0 0
    %273 = vmatpush2.bf16.msra.mxu0 0
    %274 = vmatprep.subr.bf16.mxu0 0
    %275 = vmatpush2.bf16.msra.mxu0 0
    %276 = vmatprep.subr.bf16.mxu0 0
    %277 = vmatpush2.bf16.msra.mxu0 0
    %278 = vmatprep.subr.bf16.mxu0 0
    %279 = vmatpush2.bf16.msra.mxu0 0
    %280 = vmatprep.subr.bf16.mxu0 0
    %281 = vmatpush2.bf16.msra.mxu0 0
    %282 = vmatprep.subr.bf16.mxu0 0
    %283 = vmatpush2.bf16.msra.mxu0 0
    %284 = vmatprep.subr.bf16.mxu0 0
    %285 = vmatpush2.bf16.msra.mxu0 0
    %286 = vmatprep.mubr.bf16.mxu0 0
    %287 = vmatmul.mubr.bf16.gmra.mxu0 %v185
    %v288 = vpop.f32.mrf.mxu0
    %v289 = vadd.f32 %v205, %v288
    %v290 = vpop.f32.mrf.mxu0
    %v291 = vpop.f32.mrf.mxu0
    %v292 = vpop.f32.mrf.mxu0
    %293 = vdwg.mxu0
    %294 = vadd.xlane.f32.xlu0 %v289
    %v295 = vpop.xlane.xlu0 %294
    %v296 = vmul.f32 %v295, %v161
    %v297 = vmul.f32 %v289, %v289
    %298 = vadd.xlane.f32.xlu0 %v297
    %v299 = vpop.xlane.xlu0 %298
    %v300 = vmul.f32 %v299, %v161
    %v301 = vmul.f32 %v296, %v296
    %v302 = vsub.f32 %v300, %v301
    %v303 = vmax.f32 %v302, 0.0
    %v304 = vsub.f32 %v289, %v296
    %v305 = vadd.f32 %v303, 1e-05
    %v306 = vrsqrt.pop %v305
    %v307 = vmul.f32 %v304, %v306
    %v308 = vlaneseq
    %v309 = vshrl.u32 %v308, 7
    %v310 = vsub.s32 0, %v309
    %v311 = vrot.slane %v90, %v310
    %v312 = vmul.f32 %v307, %v311
    %v313 = vlaneseq
    %v314 = vshrl.u32 %v313, 7
    %v315 = vsub.s32 0, %v314
    %v316 = vrot.slane %v91, %v315
    %v317 = vadd.f32 %v312, %v316
    %v318 = vpack.c.bf16 %v317, %v317
    %v319 = vtanh.bf16.pop %v318
    %v320 = vld [vmem:[#allocation8] sm:$0xf]
    %v321 = vld [vmem:[#allocation8 + $0x4] sm:$0xf]
    %v322 = vld [vmem:[#allocation8 + $0x8] sm:$0xf]
    %v323 = vld [vmem:[#allocation8 + $0xc] sm:$0xf]
    %v324 = vld [vmem:[#allocation8 + $0x10] sm:$0xf]
    %v325 = vld [vmem:[#allocation8 + $0x14] sm:$0xf]
    %v326 = vld [vmem:[#allocation8 + $0x18] sm:$0xf]
    %v327 = vld [vmem:[#allocation8 + $0x1c] sm:$0xf]
    %v328 = vld [vmem:[#allocation8 + $0x20] sm:$0xf]
    %v329 = vld [vmem:[#allocation8 + $0x24] sm:$0xf]
    %v330 = vld [vmem:[#allocation8 + $0x28] sm:$0xf]
    %v331 = vld [vmem:[#allocation8 + $0x2c] sm:$0xf]
    %v332 = vld [vmem:[#allocation8 + $0x30] sm:$0xf]
    %v333 = vld [vmem:[#allocation8 + $0x34] sm:$0xf]
    %v334 = vld [vmem:[#allocation8 + $0x38] sm:$0xf]
    %v335 = vld [vmem:[#allocation8 + $0x3c] sm:$0xf]
    %v336 = vlaneseq
    %v337 = vshrl.u32 %v336, 7
    %v338 = vsub.s32 0, %v337
    %v339 = vrot.slane %v92, %v338
    %v356 = vunpack.c.l.b16 %v320
    %v357 = vunpack.c.l.b16 %v321
    %v358 = vunpack.c.l.b16 %v322
    %v359 = vunpack.c.l.b16 %v323
    %v360 = vunpack.c.l.b16 %v324
    %v361 = vunpack.c.l.b16 %v325
    %v362 = vunpack.c.l.b16 %v326
    %v363 = vunpack.c.l.b16 %v327
    %v364 = vunpack.c.l.b16 %v328
    %v365 = vunpack.c.l.b16 %v329
    %v366 = vunpack.c.l.b16 %v330
    %v367 = vunpack.c.l.b16 %v331
    %v368 = vunpack.c.l.b16 %v332
    %v369 = vunpack.c.l.b16 %v333
    %v370 = vunpack.c.l.b16 %v334
    %v371 = vunpack.c.l.b16 %v335
    %v372 = vpack.c.b16 %v357, %v356
    %v373 = vpack.c.b16 %v359, %v358
    %v374 = vpack.c.b16 %v361, %v360
    %v375 = vpack.c.b16 %v363, %v362
    %v376 = vpack.c.b16 %v365, %v364
    %v377 = vpack.c.b16 %v367, %v366
    %v378 = vpack.c.b16 %v369, %v368
    %v379 = vpack.c.b16 %v371, %v370
    %388 = vmatprep.subr.bf16.mxu0 0
    %389 = vmatpush1.bf16.msra.mxu0 %v379
    %390 = vmatprep.subr.bf16.mxu0 0
    %391 = vmatpush1.bf16.msra.mxu0 %v378
    %392 = vmatprep.subr.bf16.mxu0 0
    %393 = vmatpush1.bf16.msra.mxu0 %v377
    %394 = vmatprep.subr.bf16.mxu0 0
    %395 = vmatpush1.bf16.msra.mxu0 %v376
    %396 = vmatprep.subr.bf16.mxu0 0
    %397 = vmatpush1.bf16.msra.mxu0 %v375
    %398 = vmatprep.subr.bf16.mxu0 0
    %399 = vmatpush1.bf16.msra.mxu0 %v374
    %400 = vmatprep.subr.bf16.mxu0 0
    %401 = vmatpush1.bf16.msra.mxu0 %v373
    %402 = vmatprep.subr.bf16.mxu0 0
    %403 = vmatpush1.bf16.msra.mxu0 %v372
    %404 = vmatprep.subr.bf16.mxu0 0
    %405 = vmatpush2.bf16.msra.mxu0 0
    %406 = vmatprep.subr.bf16.mxu0 0
    %407 = vmatpush2.bf16.msra.mxu0 0
    %408 = vmatprep.subr.bf16.mxu0 0
    %409 = vmatpush2.bf16.msra.mxu0 0
    %410 = vmatprep.subr.bf16.mxu0 0
    %411 = vmatpush2.bf16.msra.mxu0 0
    %412 = vmatprep.subr.bf16.mxu0 0
    %413 = vmatpush2.bf16.msra.mxu0 0
    %414 = vmatprep.subr.bf16.mxu0 0
    %415 = vmatpush2.bf16.msra.mxu0 0
    %416 = vmatprep.subr.bf16.mxu0 0
    %417 = vmatpush2.bf16.msra.mxu0 0
    %418 = vmatprep.subr.bf16.mxu0 0
    %419 = vmatpush2.bf16.msra.mxu0 0
    %420 = vmatprep.mubr.bf16.mxu0 0
    %421 = vmatmul.mubr.bf16.gmra.mxu0 %v319
    %v422 = vpop.f32.mrf.mxu0
    %v423 = vadd.f32 %v339, %v422
    %v424 = vpop.f32.mrf.mxu0
    %v425 = vpop.f32.mrf.mxu0
    %v426 = vpop.f32.mrf.mxu0
    %427 = vdwg.mxu0
    %428 = vmax.xlane.f32.xlu0 %v423
    %v429 = vpop.xlane.xlu0 %428
    %v430 = vsub.f32 %v423, %v429
    %v431 = vmul.f32 %v430, 1.442695
    %v432 = vpow.pop %v431
    %433 = vadd.xlane.f32.xlu0 %v432
    %v434 = vpop.xlane.xlu0 %433
    %v435 = vrcp.pop %v434
    %v436 = vmul.f32 %v432, %v435
    %v437 = vpack.c.bf16 %v436, %v436
    %vm438 = vcmask 60416
    %439 = vst.msk [vmem:[#allocation11] sm:$0xf] %vm438, %v437
    // Predicated region
    $region42: #{tpu_custom_call.1} parent=1 // pred_check
      _
    $region43: #{tpu_custom_call.1} parent=1 // pred_check_branch
      %441 = sbr.rel (0) target = $region45
    $region44: #{tpu_custom_call.1} parent=1 // pred_region
      %s443 = ssub.s32 64, 64
      %444 = vsyncadd [#allocation4], %s443
      %s446 = sshll.u32 [#allocation11], 4
      %s447 = int_to_ptr.vmem [resolvable:$true] %s446
      %449 = dma.vmem_to_hbm [thread:$0]  %s447, 64, %s5, [#allocation4]
    $region45: #{tpu_custom_call.1} parent=1 // pred_fallthru
      _
    // Predicated region
    $region46: #{tpu_custom_call.1} parent=1 // pred_check
      _
    $region47: #{tpu_custom_call.1} parent=1 // pred_check_branch
      %451 = sbr.rel (0) target = $region49
    $region48: #{tpu_custom_call.1} parent=1 // pred_region
      %452 = dma.done [#allocation4], 64
    $region49: #{tpu_custom_call.1} parent=1 // pred_fallthru
      _
    %453 = vsyncpa [#allocation3], 1
    %454 = vsyncpa [#allocation6], 1
    %455 = vsyncpa [#allocation9], 1
    %456 = vsyncpa [#allocation4], 1

</llo_original>
